<compile_context>
chip_gen: v7x
topology: tpu7x:2x2x1
jax: 0.10.0
libtpu: 0.0.40
codegen_flags: <defaults>
</compile_context>

<pallas_src>
import math

import jax
import jax.numpy as jnp
from jax.experimental import pallas as pl
from jax.experimental.pallas import tpu as pltpu


def _encoder_kernel(x_ref, w_ref, b_ref, o_ref):
    # x_ref: (TB, D_in) tile of raw features (native dtype)
    # w_ref: (D_in, D_pad) full (transposed, lane-padded) Linear weight
    # b_ref: (1, D_pad) bias
    # o_ref: (TB, D_pad) output tile
    x = x_ref[...]

    # Raw matmul on the MXU (operands in native dtype, f32 accumulation).
    s = jnp.dot(x, w_ref[...], preferred_element_type=jnp.float32)

    # Fold the input L2-norm into a post-matmul row scale:
    #   (x / ||x||) @ W  ==  (x @ W) * rsqrt(sum(x^2))
    # Sum-of-squares and rsqrt stay in f32 for precision.
    xf = x.astype(jnp.float32)
    inv_x = jax.lax.rsqrt(jnp.sum(xf * xf, axis=-1, keepdims=True))

    b = b_ref[...].astype(jnp.float32)          # hoisted once per block
    y = s * inv_x + b                           # bias AFTER the scale

    # Second L2-norm, rsqrt + multiply.
    inv_y = jax.lax.rsqrt(jnp.sum(y * y, axis=-1, keepdims=True))
    o_ref[...] = (y * inv_y).astype(o_ref.dtype)


def image_feature_encoder(features, weight_t, bias, *, tile_b=None):
    """features: (B, D_in); weight_t: (D_in, D_out); bias: (D_out,)."""
    B, D_in = features.shape
    D_out = weight_t.shape[1]

    # Lane-dense output: pad D_out up to a multiple of 128.  The padded weight
    # columns / bias entries are zero, so the padded output columns are zero
    # and the row L2-norm is unchanged; slice the pad off afterwards.
    D_pad = D_out
    if D_out % 128 != 0:
        D_pad = ((D_out + 127) // 128) * 128
        weight_t = jnp.pad(weight_t, ((0, 0), (0, D_pad - D_out)))
        bias = jnp.pad(bias, (0, D_pad - D_out))

    # Batch tile: MXU-row-aligned when the batch allows it (gives a pipelined,
    # megacore-shardable grid on large batches); otherwise one tile.
    if tile_b is None:
        tile_b = B
        for cand in (512, 256, 128):
            if B % cand == 0:
                tile_b = cand
                break
    assert B % tile_b == 0, "batch must be divisible by tile_b"

    bias2d = bias.reshape(1, D_pad)

    itemsize = features.dtype.itemsize
    cost = pl.CostEstimate(
        flops=2 * B * D_in * D_pad,
        transcendentals=2 * B,  # two rsqrt per row
        bytes_accessed=(B * D_in + D_in * D_pad + D_pad + B * D_pad) * itemsize,
    )

    out = pl.pallas_call(
        _encoder_kernel,
        out_shape=jax.ShapeDtypeStruct((B, D_pad), features.dtype),
        grid_spec=pltpu.PrefetchScalarGridSpec(
            num_scalar_prefetch=0,
            grid=(B // tile_b,),
            in_specs=[
                pl.BlockSpec((tile_b, D_in), lambda i: (i, 0)),
                # Weight / bias never change across the grid -> single buffer.
                pl.BlockSpec((D_in, D_pad), lambda i: (0, 0),
                             pipeline_mode=pl.Buffered(1)),
                pl.BlockSpec((1, D_pad), lambda i: (0, 0),
                             pipeline_mode=pl.Buffered(1)),
            ],
            out_specs=pl.BlockSpec((tile_b, D_pad), lambda i: (i, 0)),
        ),
        compiler_params=pltpu.CompilerParams(
            dimension_semantics=("parallel",)),
        cost_estimate=cost,
    )(features, weight_t, bias2d)

    return out[:, :D_out] if D_pad != D_out else out


def _reference(features, weight_t, bias):
    x = features.astype(jnp.float32)
    xn = x / jnp.linalg.norm(x, axis=-1, keepdims=True)
    y = xn @ weight_t.astype(jnp.float32) + bias.astype(jnp.float32)
    return y / jnp.linalg.norm(y, axis=-1, keepdims=True)


if __name__ == "__main__":
    # Small shapes consistent with the module: batch=8, img_feat_dim=32, rnn_dim=16.
    B = 8
    img_feat_dim = 32
    rnn_dim = 16
    D_out = 2 * rnn_dim

    key = jax.random.PRNGKey(0)
    k_x, k_w = jax.random.split(key)

    features = jax.random.normal(k_x, (B, img_feat_dim), dtype=jnp.float32)

    # Deterministic xavier-uniform init of the Linear weight (fan_in=D_in, fan_out=D_out).
    limit = math.sqrt(6.0 / (img_feat_dim + D_out))
    # PyTorch weight is (D_out, D_in); the kernel takes the transpose (D_in, D_out).
    weight = jax.random.uniform(k_w, (D_out, img_feat_dim),
                                minval=-limit, maxval=limit, dtype=jnp.float32)
    weight_t = weight.T
    bias = jnp.zeros((D_out,), dtype=jnp.float32)

    out = image_feature_encoder(features, weight_t, bias)
    out = jax.block_until_ready(out)

    ref = _reference(features, weight_t, bias)
    assert out.shape == (B, D_out)
    assert jnp.allclose(out, ref, atol=1e-5, rtol=1e-5), "mismatch vs reference"

    # TODO(synk): like the PyTorch reference, an all-zero feature row yields NaN
    # (0 * inf); add jnp.maximum(sumsq, eps) if robustness is needed.
    print("KERNEL_OK")
</pallas_src>

<mosaic_0001>
module attributes {stable_mosaic.version = 11 : i64} {
  func.func @_encoder_kernel(%arg0: i32, %arg1: memref<8x32xf32, #tpu.memory_space<vmem>>, %arg2: memref<32x128xf32, #tpu.memory_space<vmem>>, %arg3: memref<1x128xf32, #tpu.memory_space<vmem>>, %arg4: memref<8x128xf32, #tpu.memory_space<vmem>>) attributes {dimension_semantics = [#tpu.dimension_semantics<parallel>], iteration_bounds = array<i64: 1>, scalar_prefetch = 0 : i64, scratch_operands = 0 : i64, tpu.core_type = #tpu.core_type<tc>, window_params = [{transform_indices = @transform_0, window_bounds = array<i64: 8, 32>}, {pipeline_mode = #tpu.pipeline_mode<synchronous>, transform_indices = @transform_1, window_bounds = array<i64: 32, 128>}, {pipeline_mode = #tpu.pipeline_mode<synchronous>, transform_indices = @transform_2, window_bounds = array<i64: 1, 128>}, {transform_indices = @transform_3, window_bounds = array<i64: 8, 128>}]} {
    %c0 = arith.constant 0 : index
    %c0_0 = arith.constant 0 : index
    %0 = vector.load %arg1[%c0, %c0_0] : memref<8x32xf32, #tpu.memory_space<vmem>>, vector<8x32xf32>
    %c0_1 = arith.constant 0 : index
    %c0_2 = arith.constant 0 : index
    %1 = vector.load %arg2[%c0_1, %c0_2] : memref<32x128xf32, #tpu.memory_space<vmem>>, vector<32x128xf32>
    %cst = arith.constant dense<0.000000e+00> : vector<8x128xf32>
    %2 = tpu.matmul %0, %1, %cst {dimension_numbers = #tpu.dot_dimension_numbers<[1], [0], [0], [1], [0, 0, 1, 1], [], []>} : vector<8x32xf32>, vector<32x128xf32>, vector<8x128xf32> -> vector<8x128xf32>
    %3 = arith.mulf %0, %0 : vector<8x32xf32>
    %cst_3 = arith.constant dense<0.000000e+00> : vector<8xf32>
    %4 = vector.multi_reduction <add>, %3, %cst_3 [1] : vector<8x32xf32> to vector<8xf32>
    %5 = vector.shape_cast %4 : vector<8xf32> to vector<8x1xf32>
    %6 = math.rsqrt %5 : vector<8x1xf32>
    %c0_4 = arith.constant 0 : index
    %c0_5 = arith.constant 0 : index
    %7 = vector.load %arg3[%c0_4, %c0_5] : memref<1x128xf32, #tpu.memory_space<vmem>>, vector<1x128xf32>
    %8 = vector.broadcast %6 : vector<8x1xf32> to vector<8x128xf32>
    %9 = arith.mulf %2, %8 : vector<8x128xf32>
    %10 = vector.broadcast %7 : vector<1x128xf32> to vector<8x128xf32>
    %11 = arith.addf %9, %10 : vector<8x128xf32>
    %12 = arith.mulf %11, %11 : vector<8x128xf32>
    %cst_6 = arith.constant dense<0.000000e+00> : vector<8xf32>
    %13 = vector.multi_reduction <add>, %12, %cst_6 [1] : vector<8x128xf32> to vector<8xf32>
    %14 = vector.shape_cast %13 : vector<8xf32> to vector<8x1xf32>
    %15 = math.rsqrt %14 : vector<8x1xf32>
    %16 = vector.broadcast %15 : vector<8x1xf32> to vector<8x128xf32>
    %17 = arith.mulf %11, %16 : vector<8x128xf32>
    %c0_7 = arith.constant 0 : index
    %c0_8 = arith.constant 0 : index
    %18 = vector.load %arg4[%c0_7, %c0_8] : memref<8x128xf32, #tpu.memory_space<vmem>>, vector<8x128xf32>
    tpu.vector_store %arg4[%c0_7, %c0_8], %17 {strides = array<i32>} : memref<8x128xf32, #tpu.memory_space<vmem>>, vector<8x128xf32>,
    return
  }
  func.func @transform_0(%arg0: i32) -> (i32, i32) {
    %c0_i32 = arith.constant 0 : i32
    %c0_i32_0 = arith.constant 0 : i32
    return %arg0, %c0_i32 : i32, i32
  }
  func.func @transform_1(%arg0: i32) -> (i32, i32) {
    %c0_i32 = arith.constant 0 : i32
    %c0_i32_0 = arith.constant 0 : i32
    %c0_i32_1 = arith.constant 0 : i32
    return %c0_i32, %c0_i32_0 : i32, i32
  }
  func.func @transform_2(%arg0: i32) -> (i32, i32) {
    %c0_i32 = arith.constant 0 : i32
    %c0_i32_0 = arith.constant 0 : i32
    %c0_i32_1 = arith.constant 0 : i32
    return %c0_i32, %c0_i32_0 : i32, i32
  }
  func.func @transform_3(%arg0: i32) -> (i32, i32) {
    %c0_i32 = arith.constant 0 : i32
    %c0_i32_0 = arith.constant 0 : i32
    return %arg0, %c0_i32 : i32, i32
  }
}

</mosaic_0001>

<llo_original>
// kernel: tpu_custom_call.1
$region0: #{tpu_custom_call.1}
  #allocation0 [shape = 'u32[]', space=smem, size = 0x4, offset = 0x4, fixed_abs, tag = 'smem constant byte address 0x4 - core index']
  #allocation1 [shape = 'u32[144,128]{1,0:T(1,128)}', space=vmem, size = 0x12000, scoped, tag = 'internal scratch']
  %s0 = inlined_call_operand.hbm [shape: f32[8,32], index: 0, kind: input, shape index: {}]
  %s1 = inlined_call_operand.hbm [shape: f32[32,128], index: 1, kind: input, shape index: {}]
  %s2 = inlined_call_operand.vmem [shape: f32[1,128], index: 2, kind: input, shape index: {}]
  %s3 = inlined_call_operand.hbm [shape: f32[8,128], index: 3, kind: output, shape index: {}]
  %s4 = sld [smem:[#allocation0]]
  $region30: #{tpu_custom_call.1} parent=0
    _
  %s6 = ssub.s32 1, %s4
  %s7 = scalar_select 0, %s6, %s4
  $region1: #{tpu_custom_call.1} parent=0
    #allocation2 [shape = 'u8[4096]{0}', space=vmem, size = 0x1000, scoped, tag = 'input window, operand 0, single buffered']
    #allocation3 [shape = 's32[1]{0}', space=sflag, size = 0x4, scoped, tag = 'scoped memory for tpu_custom_call.1']
    #allocation4 [shape = 's32[1]{0}', space=sflag, size = 0x4, scoped, tag = 'scoped memory for tpu_custom_call.1']
    #allocation5 [shape = 'u8[16384]{0}', space=vmem, size = 0x4000, scoped, tag = 'input window, operand 1, single buffered']
    #allocation6 [shape = 's32[1]{0}', space=sflag, size = 0x4, scoped, tag = 'scoped memory for tpu_custom_call.1']
    #allocation7 [shape = 'u8[4096]{0}', space=vmem, size = 0x1000, scoped, tag = 'output window, operand 0, single buffered']
    %8 = vsyncpa [#allocation3], 0
    %9 = vsyncpa [#allocation6], 0
    %10 = vsyncpa [#allocation4], 0
    // Predicated region
    $region2: #{tpu_custom_call.1} parent=1 // pred_check
      _
    $region3: #{tpu_custom_call.1} parent=1 // pred_check_branch
      %12 = sbr.rel (0) target = $region5
    $region4: #{tpu_custom_call.1} parent=1 // pred_region
      %s14 = ssub.s32 128, 128
      %15 = vsyncadd [#allocation3], %s14
      %s17 = sshll.u32 [#allocation2], 4
      %s18 = int_to_ptr.vmem [resolvable:$true] %s17
      %20 = dma.hbm_to_vmem [thread:$0]  %s0, 128, %s18, [#allocation3]
    $region5: #{tpu_custom_call.1} parent=1 // pred_fallthru
      _
    // Predicated region
    $region6: #{tpu_custom_call.1} parent=1 // pred_check
      _
    $region7: #{tpu_custom_call.1} parent=1 // pred_check_branch
      %22 = sbr.rel (0) target = $region9
    $region8: #{tpu_custom_call.1} parent=1 // pred_region
      %s24 = ssub.s32 512, 512
      %25 = vsyncadd [#allocation6], %s24
      %s26 = sshll.u32 [#allocation5], 4
      %s27 = int_to_ptr.vmem [resolvable:$true] %s26
      %32 = dma.hbm_to_vmem [thread:$0]  %s1, 512, %s27, [#allocation6], 128, 128, 8
    $region9: #{tpu_custom_call.1} parent=1 // pred_fallthru
      _
    // Predicated region
    $region10: #{tpu_custom_call.1} parent=1 // pred_check
      _
    $region11: #{tpu_custom_call.1} parent=1 // pred_check_branch
      %34 = sbr.rel (0) target = $region13
    $region12: #{tpu_custom_call.1} parent=1 // pred_region
      _
    $region13: #{tpu_custom_call.1} parent=1 // pred_fallthru
      _
    // Predicated region
    $region14: #{tpu_custom_call.1} parent=1 // pred_check
      _
    $region15: #{tpu_custom_call.1} parent=1 // pred_check_branch
      %36 = sbr.rel (0) target = $region17
    $region16: #{tpu_custom_call.1} parent=1 // pred_region
      %37 = dma.done [#allocation3], 128
    $region17: #{tpu_custom_call.1} parent=1 // pred_fallthru
      _
    // Predicated region
    $region18: #{tpu_custom_call.1} parent=1 // pred_check
      _
    $region19: #{tpu_custom_call.1} parent=1 // pred_check_branch
      %39 = sbr.rel (0) target = $region21
    $region20: #{tpu_custom_call.1} parent=1 // pred_region
      %40 = dma.done [#allocation6], 512
    $region21: #{tpu_custom_call.1} parent=1 // pred_fallthru
      _
    %v41 = vld [vmem:[#allocation2] sm:$0xff]
    %v42 = vld [vmem:[#allocation5] sm:$0xff]
    %v43 = vld [vmem:[#allocation5 + $0x8] sm:$0xff]
    %v44 = vld [vmem:[#allocation5 + $0x10] sm:$0xff]
    %v45 = vld [vmem:[#allocation5 + $0x18] sm:$0xff]
    %vm46 = vcmask 261120
    %v48 = vsel %vm46, %v41, 0
    %50 = vmatprep.subr.mxu0 0.0
    %51 = vmatpush1.msra.mxu0 %v42
    %52 = vmatprep.subr.mxu0 0.0
    %53 = vmatpush1.msra.mxu0 %v43
    %54 = vmatprep.subr.mxu0 0.0
    %55 = vmatpush1.msra.mxu0 %v44
    %56 = vmatprep.subr.mxu0 0.0
    %57 = vmatpush1.msra.mxu0 %v45
    %58 = vmatprep.subr.mxu0 0.0
    %59 = vmatpush1.msra.mxu0 0.0
    %60 = vmatprep.subr.mxu0 0.0
    %61 = vmatpush1.msra.mxu0 0.0
    %62 = vmatprep.subr.mxu0 0.0
    %63 = vmatpush1.msra.mxu0 0.0
    %64 = vmatprep.subr.mxu0 0.0
    %65 = vmatpush1.msra.mxu0 0.0
    %66 = vmatprep.subr.mxu0 0.0
    %67 = vmatpush1.msra.mxu0 0.0
    %68 = vmatprep.subr.mxu0 0.0
    %69 = vmatpush1.msra.mxu0 0.0
    %70 = vmatprep.subr.mxu0 0.0
    %71 = vmatpush1.msra.mxu0 0.0
    %72 = vmatprep.subr.mxu0 0.0
    %73 = vmatpush1.msra.mxu0 0.0
    %74 = vmatprep.subr.mxu0 0.0
    %75 = vmatpush1.msra.mxu0 0.0
    %76 = vmatprep.subr.mxu0 0.0
    %77 = vmatpush1.msra.mxu0 0.0
    %78 = vmatprep.subr.mxu0 0.0
    %79 = vmatpush1.msra.mxu0 0.0
    %80 = vmatprep.subr.mxu0 0.0
    %81 = vmatpush1.msra.mxu0 0.0
    %82 = vmatprep.subr.mxu0 0.0
    %83 = vmatpush1.msra.mxu0 0.0
    %84 = vmatprep.subr.mxu0 0.0
    %85 = vmatpush1.msra.mxu0 0.0
    %86 = vmatprep.subr.mxu0 0.0
    %87 = vmatpush1.msra.mxu0 0.0
    %88 = vmatprep.subr.mxu0 0.0
    %89 = vmatpush1.msra.mxu0 0.0
    %90 = vmatprep.subr.mxu0 0.0
    %91 = vmatpush1.msra.mxu0 0.0
    %92 = vmatprep.subr.mxu0 0.0
    %93 = vmatpush1.msra.mxu0 0.0
    %94 = vmatprep.subr.mxu0 0.0
    %95 = vmatpush1.msra.mxu0 0.0
    %96 = vmatprep.subr.mxu0 0.0
    %97 = vmatpush1.msra.mxu0 0.0
    %98 = vmatprep.subr.mxu0 0.0
    %99 = vmatpush1.msra.mxu0 0.0
    %100 = vmatprep.subr.mxu0 0.0
    %101 = vmatpush1.msra.mxu0 0.0
    %102 = vmatprep.subr.mxu0 0.0
    %103 = vmatpush1.msra.mxu0 0.0
    %104 = vmatprep.subr.mxu0 0.0
    %105 = vmatpush1.msra.mxu0 0.0
    %106 = vmatprep.subr.mxu0 0.0
    %107 = vmatpush1.msra.mxu0 0.0
    %108 = vmatprep.subr.mxu0 0.0
    %109 = vmatpush1.msra.mxu0 0.0
    %110 = vmatprep.subr.mxu0 0.0
    %111 = vmatpush1.msra.mxu0 0.0
    %112 = vmatprep.subr.mxu0 0.0
    %113 = vmatpush1.msra.mxu0 0.0
    %114 = vmatprep.mubr.f32.mxu0 0.0
    %115 = vmatmul.mubr.f32.gmra.mrb[0].mxu0 %v48
    %v116 = vpop.f32.mrb[0].mxu0
    %v117 = vadd.f32 0.0, %v116
    %v118 = vpop.f32.mrb[0].mxu0
    %119 = vdwg.mxu0
    %v120 = vmul.f32 %v41, %v41
    %v121 = vsel %vm46, %v120, 0.0
    %122 = vadd.xlane.f32.xlu0 %v121
    %v123 = vpop.xlane.xlu0 %122
    %v124 = vrsqrt.pop %v123
    %v125 = vld [vmem:[%s2] sm:$0x1]
    %v126 = vmul.f32 %v117, %v124
    %v128 = vlaneseq
    %v129 = vshrl.u32 %v128, 7
    %v130 = vsub.s32 0, %v129
    %v131 = vrot.slane %v125, %v130
    %v133 = vadd.f32 %v126, %v131
    %v134 = vmul.f32 %v133, %v133
    %135 = vadd.xlane.f32.xlu0 %v134
    %v136 = vpop.xlane.xlu0 %135
    %v137 = vrsqrt.pop %v136
    %v138 = vmul.f32 %v133, %v137
    %139 = vst [vmem:[#allocation7] sm:$0xff] %v138
    // Predicated region
    $region22: #{tpu_custom_call.1} parent=1 // pred_check
      _
    $region23: #{tpu_custom_call.1} parent=1 // pred_check_branch
      %141 = sbr.rel (0) target = $region25
    $region24: #{tpu_custom_call.1} parent=1 // pred_region
      %s143 = ssub.s32 128, 128
      %144 = vsyncadd [#allocation4], %s143
      %s146 = sshll.u32 [#allocation7], 4
      %s147 = int_to_ptr.vmem [resolvable:$true] %s146
      %149 = dma.vmem_to_hbm [thread:$0]  %s147, 128, %s3, [#allocation4]
    $region25: #{tpu_custom_call.1} parent=1 // pred_fallthru
      _
    // Predicated region
    $region26: #{tpu_custom_call.1} parent=1 // pred_check
      _
    $region27: #{tpu_custom_call.1} parent=1 // pred_check_branch
      %151 = sbr.rel (0) target = $region29
    $region28: #{tpu_custom_call.1} parent=1 // pred_region
      %152 = dma.done [#allocation4], 128
    $region29: #{tpu_custom_call.1} parent=1 // pred_fallthru
      _
    %153 = vsyncpa [#allocation3], 1
    %154 = vsyncpa [#allocation6], 1
    %155 = vsyncpa [#allocation4], 1

</llo_original>
